<compile_context>
chip_gen: v7x
topology: tpu7x:2x2x1
jax: 0.10.0
libtpu: 0.0.40
codegen_flags: <defaults>
</compile_context>

<pallas_src>
import functools

import jax
import jax.numpy as jnp
from jax.experimental import pallas as pl
from jax.experimental.pallas import tpu as pltpu


def _round_up(x: int, m: int) -> int:
    return ((x + m - 1) // m) * m


# ----------------------------------------------------------------------------
# Kernels
# ----------------------------------------------------------------------------
def _linear_temp_kernel_stream(temp_ref, x_ref, w_ref, b_ref, o_ref):
    """Single K tile: logits = x @ w + b, then divide by temperature."""
    # temp_ref: SMEM f32[1]
    # x_ref:    VMEM bf16[tm, Dp]
    # w_ref:    VMEM bf16[Dp, tn]
    # b_ref:    VMEM f32[1, tn]
    # o_ref:    VMEM f32[tm, tn]
    logits = jnp.dot(x_ref[...], w_ref[...],
                     preferred_element_type=jnp.float32) + b_ref[...]
    o_ref[...] = (logits / temp_ref[0]).astype(o_ref.dtype)


def _linear_temp_kernel_acc(temp_ref, x_ref, w_ref, b_ref, o_ref, acc_ref):
    """Multi K-tile path: f32 accumulator, epilogue-only bias + temperature."""
    k = pl.program_id(2)

    @pl.when(k == 0)
    def _init():
        acc_ref[...] = jnp.zeros_like(acc_ref)

    acc_ref[...] += jnp.dot(x_ref[...], w_ref[...],
                            preferred_element_type=jnp.float32)

    @pl.when(k == pl.num_programs(2) - 1)
    def _finalize():
        logits = acc_ref[...] + b_ref[...]
        o_ref[...] = (logits / temp_ref[0]).astype(o_ref.dtype)


# ----------------------------------------------------------------------------
# Wrapper
# ----------------------------------------------------------------------------
@functools.partial(jax.jit, static_argnames=("tm", "tn", "tk"))
def model_with_temperature_forward(x, w, b, temperature, *,
                                   tm: int = 128, tn: int = 128, tk: int = 512):
    """Fused forward: (x @ w + b) / temperature inside one Pallas kernel.

    x: f32[B, D], w: f32[D, C], b: f32[C], temperature: f32[1] -> f32[B, C]
    """
    B, D = x.shape
    D2, C = w.shape
    assert D == D2, "feature dims must match"

    # --- tile sizing ---------------------------------------------------------
    # Batch tile: multiple of 16 (bf16 sublane packing), capped at tm.
    tm = min(tm, _round_up(B, 16))
    # Class tile: lane-dense (multiple of 128).
    tn = min(tn, _round_up(C, 128))
    # Reduction tile: multiple of 128, capped at tk.
    tk = min(tk, _round_up(D, 128))

    Bp = _round_up(B, tm)
    Cp = _round_up(C, tn)
    Dp = _round_up(D, tk)

    # --- pad + cast (bf16 inputs for the MXU; bias/output stay f32) ----------
    x_p = jnp.pad(x.astype(jnp.bfloat16), ((0, Bp - B), (0, Dp - D)))
    w_p = jnp.pad(w.astype(jnp.bfloat16), ((0, Dp - D), (0, Cp - C)))
    b_p = jnp.pad(b.astype(jnp.float32).reshape(1, C), ((0, 0), (0, Cp - C)))
    t = temperature.astype(jnp.float32).reshape((1,))

    nm, nn, nk = Bp // tm, Cp // tn, Dp // tk

    temp_spec = pl.BlockSpec(memory_space=pltpu.MemorySpace.SMEM)
    compiler_params_kwargs = dict(vmem_limit_bytes=32 * 1024 * 1024)

    if nk == 1:
        # Reduction fits in one tile: no K grid axis, no accumulator scratch.
        grid = (nm, nn)
        kernel = _linear_temp_kernel_stream
        in_specs = [
            temp_spec,
            pl.BlockSpec((tm, tk), lambda i, j: (i, 0)),   # x
            pl.BlockSpec((tk, tn), lambda i, j: (0, j)),   # w
            pl.BlockSpec((1, tn), lambda i, j: (0, j)),    # bias
        ]
        out_spec = pl.BlockSpec((tm, tn), lambda i, j: (i, j))
        scratch = []
        dims = ("parallel", "parallel")
    else:
        # General case: accumulate over K tiles in an f32 VMEM scratch.
        grid = (nm, nn, nk)
        kernel = _linear_temp_kernel_acc
        in_specs = [
            temp_spec,
            pl.BlockSpec((tm, tk), lambda i, j, k: (i, k)),  # x
            pl.BlockSpec((tk, tn), lambda i, j, k: (k, j)),  # w
            pl.BlockSpec((1, tn), lambda i, j, k: (0, j)),   # bias
        ]
        out_spec = pl.BlockSpec((tm, tn), lambda i, j, k: (i, j))
        scratch = [pltpu.VMEM((tm, tn), jnp.float32)]
        dims = ("parallel", "parallel", "arbitrary")

    out_p = pl.pallas_call(
        kernel,
        out_shape=jax.ShapeDtypeStruct((Bp, Cp), jnp.float32),
        grid=grid,
        in_specs=in_specs,
        out_specs=out_spec,
        scratch_shapes=scratch,
        compiler_params=pltpu.CompilerParams(
            dimension_semantics=dims, **compiler_params_kwargs),
    )(t, x_p, w_p, b_p)

    # Slice the lane/sublane padding back off.
    return out_p[:B, :C]


def reference_forward(x, w, b, temperature):
    """Plain-JAX reference with the same bf16 matmul precision."""
    logits = jnp.dot(x.astype(jnp.bfloat16), w.astype(jnp.bfloat16),
                     preferred_element_type=jnp.float32)
    logits = logits + b.astype(jnp.float32).reshape(1, -1)
    temp = jnp.broadcast_to(temperature.reshape(1, 1), logits.shape)
    return logits / temp


# TODO(synk): set_temperature() (LBFGS fit of the temperature on a validation
# set) and _ECELoss are host-side training-time utilities, not part of
# forward(); they are intentionally not ported to a Pallas kernel.


if __name__ == "__main__":
    key = jax.random.PRNGKey(0)
    kx, kw, kb, kx2, kw2, kb2 = jax.random.split(key, 6)

    # nn.Parameter(1.0 * torch.ones(1)) -> shape (1,); use a non-trivial value.
    temperature = jnp.ones((1,), dtype=jnp.float32) * 1.5

    # ---- Case 1: tiny head (streaming path, single K tile) ------------------
    B, D, C = 8, 32, 16
    x = jax.random.normal(kx, (B, D), dtype=jnp.float32)
    w = jax.random.normal(kw, (D, C), dtype=jnp.float32) * 0.1
    b = jax.random.normal(kb, (C,), dtype=jnp.float32) * 0.1

    out = model_with_temperature_forward(x, w, b, temperature)
    out = jax.block_until_ready(out)
    ref = reference_forward(x, w, b, temperature)
    assert out.shape == (B, C)
    assert jnp.allclose(out, ref, atol=1e-2, rtol=1e-2), "case 1 mismatch"

    # ---- Case 2: force the K-accumulation path (tk override) ----------------
    B2, D2, C2 = 16, 256, 16
    x2 = jax.random.normal(kx2, (B2, D2), dtype=jnp.float32)
    w2 = jax.random.normal(kw2, (D2, C2), dtype=jnp.float32) * 0.05
    b2 = jax.random.normal(kb2, (C2,), dtype=jnp.float32) * 0.1

    out2 = model_with_temperature_forward(x2, w2, b2, temperature, tk=128)
    out2 = jax.block_until_ready(out2)
    ref2 = reference_forward(x2, w2, b2, temperature)
    assert out2.shape == (B2, C2)
    assert jnp.allclose(out2, ref2, atol=1e-2, rtol=1e-2), "case 2 mismatch"

    print("KERNEL_OK")
</pallas_src>

<mosaic_0001>
module attributes {stable_mosaic.version = 11 : i64} {
  func.func @_linear_temp_kernel_stream(%arg0: i32, %arg1: i32, %arg2: memref<1xf32, #tpu.memory_space<smem>>, %arg3: memref<16x128xbf16, #tpu.memory_space<vmem>>, %arg4: memref<128x128xbf16, #tpu.memory_space<vmem>>, %arg5: memref<1x128xf32, #tpu.memory_space<vmem>>, %arg6: memref<16x128xf32, #tpu.memory_space<vmem>>) attributes {dimension_semantics = [#tpu.dimension_semantics<parallel>, #tpu.dimension_semantics<parallel>], iteration_bounds = array<i64: 1, 1>, scalar_prefetch = 0 : i64, scratch_operands = 0 : i64, tpu.core_type = #tpu.core_type<tc>, window_params = [{transform_indices = @transform_0, window_bounds = array<i64: 1>}, {transform_indices = @transform_1, window_bounds = array<i64: 16, 128>}, {transform_indices = @transform_2, window_bounds = array<i64: 128, 128>}, {transform_indices = @transform_3, window_bounds = array<i64: 1, 128>}, {transform_indices = @transform_4, window_bounds = array<i64: 16, 128>}]} {
    %c0 = arith.constant 0 : index
    %c0_0 = arith.constant 0 : index
    %0 = vector.load %arg3[%c0, %c0_0] : memref<16x128xbf16, #tpu.memory_space<vmem>>, vector<16x128xbf16>
    %c0_1 = arith.constant 0 : index
    %c0_2 = arith.constant 0 : index
    %1 = vector.load %arg4[%c0_1, %c0_2] : memref<128x128xbf16, #tpu.memory_space<vmem>>, vector<128x128xbf16>
    %cst = arith.constant dense<0.000000e+00> : vector<16x128xf32>
    %2 = tpu.matmul %0, %1, %cst {dimension_numbers = #tpu.dot_dimension_numbers<[1], [0], [0], [1], [0, 0, 1, 1], [], []>} : vector<16x128xbf16>, vector<128x128xbf16>, vector<16x128xf32> -> vector<16x128xf32>
    %c0_3 = arith.constant 0 : index
    %c0_4 = arith.constant 0 : index
    %3 = vector.load %arg5[%c0_3, %c0_4] : memref<1x128xf32, #tpu.memory_space<vmem>>, vector<1x128xf32>
    %4 = vector.broadcast %3 : vector<1x128xf32> to vector<16x128xf32>
    %5 = arith.addf %2, %4 : vector<16x128xf32>
    %c0_5 = arith.constant 0 : index
    %6 = memref.load %arg2[%c0_5] : memref<1xf32, #tpu.memory_space<smem>>
    %7 = vector.broadcast %6 : f32 to vector<16x128xf32>
    %8 = arith.divf %5, %7 : vector<16x128xf32>
    %c0_6 = arith.constant 0 : index
    %c0_7 = arith.constant 0 : index
    %9 = vector.load %arg6[%c0_6, %c0_7] : memref<16x128xf32, #tpu.memory_space<vmem>>, vector<16x128xf32>
    tpu.vector_store %arg6[%c0_6, %c0_7], %8 {strides = array<i32>} : memref<16x128xf32, #tpu.memory_space<vmem>>, vector<16x128xf32>,
    return
  }
  func.func @transform_0(%arg0: i32, %arg1: i32) -> i32 {
    %c0_i32 = arith.constant 0 : i32
    %c0_i32_0 = arith.constant 0 : i32
    return %c0_i32 : i32
  }
  func.func @transform_1(%arg0: i32, %arg1: i32) -> (i32, i32) {
    %c0_i32 = arith.constant 0 : i32
    %c0_i32_0 = arith.constant 0 : i32
    return %arg0, %c0_i32 : i32, i32
  }
  func.func @transform_2(%arg0: i32, %arg1: i32) -> (i32, i32) {
    %c0_i32 = arith.constant 0 : i32
    %c0_i32_0 = arith.constant 0 : i32
    return %c0_i32, %arg1 : i32, i32
  }
  func.func @transform_3(%arg0: i32, %arg1: i32) -> (i32, i32) {
    %c0_i32 = arith.constant 0 : i32
    %c0_i32_0 = arith.constant 0 : i32
    return %c0_i32, %arg1 : i32, i32
  }
  func.func @transform_4(%arg0: i32, %arg1: i32) -> (i32, i32) {
    %c0_i32 = arith.constant 0 : i32
    return %arg0, %arg1 : i32, i32
  }
}

</mosaic_0001>

<llo_original>
// kernel: model_with_temperature_forward.1
$region0: #{model_with_temperature_forward.1}
  #allocation0 [shape = 'u32[]', space=smem, size = 0x4, offset = 0x4, fixed_abs, tag = 'smem constant byte address 0x4 - core index']
  #allocation1 [shape = 'u32[144,128]{1,0:T(1,128)}', space=vmem, size = 0x12000, scoped, tag = 'internal scratch']
  #allocation2 [shape = 'f32[1]{0:T(128)S(6)}', space=smem, size = 0x200, scoped, tag = 'scoped memory for model_with_temperature_forward.1']
  %s0 = inlined_call_operand.<no memory space> [shape: f32[1], index: 0, kind: input, shape index: {}]
  %s1 = inlined_call_operand.vmem [shape: bf16[16,128], index: 1, kind: input, shape index: {}]
  %s2 = inlined_call_operand.vmem [shape: bf16[128,128], index: 2, kind: input, shape index: {}]
  %s3 = inlined_call_operand.vmem [shape: f32[1,128], index: 3, kind: input, shape index: {}]
  %s4 = inlined_call_operand.vmem [shape: f32[16,128], index: 4, kind: output, shape index: {}]
  %s5 = sld [smem:[#allocation0]]
  $region26: #{model_with_temperature_forward.1} parent=0
    _
  %s7 = ssub.s32 1, %s5
  %s8 = scalar_select 0, %s7, %s5
  %9 = sst [smem:[#allocation2]] %s0
  // Predicated region
  $region2: #{model_with_temperature_forward.1} parent=0 // pred_check
    _
  $region3: #{model_with_temperature_forward.1} parent=0 // pred_check_branch
    %11 = sbr.rel (0) target = $region5
  $region4: #{model_with_temperature_forward.1} parent=0 // pred_region
    _
  $region5: #{model_with_temperature_forward.1} parent=0 // pred_fallthru
    _
  // Predicated region
  $region6: #{model_with_temperature_forward.1} parent=0 // pred_check
    _
  $region7: #{model_with_temperature_forward.1} parent=0 // pred_check_branch
    %13 = sbr.rel (0) target = $region9
  $region8: #{model_with_temperature_forward.1} parent=0 // pred_region
    _
  $region9: #{model_with_temperature_forward.1} parent=0 // pred_fallthru
    _
  // Predicated region
  $region10: #{model_with_temperature_forward.1} parent=0 // pred_check
    _
  $region11: #{model_with_temperature_forward.1} parent=0 // pred_check_branch
    %15 = sbr.rel (0) target = $region13
  $region12: #{model_with_temperature_forward.1} parent=0 // pred_region
    _
  $region13: #{model_with_temperature_forward.1} parent=0 // pred_fallthru
    _
  // Predicated region
  $region14: #{model_with_temperature_forward.1} parent=0 // pred_check
    _
  $region15: #{model_with_temperature_forward.1} parent=0 // pred_check_branch
    %17 = sbr.rel (0) target = $region17
  $region16: #{model_with_temperature_forward.1} parent=0 // pred_region
    _
  $region17: #{model_with_temperature_forward.1} parent=0 // pred_fallthru
    _
  %v19 = vld [vmem:[%s1] sm:$0xf]
  %v20 = vld [vmem:[%s1 + $0x4] sm:$0xf]
  %v21 = vld [vmem:[%s2] sm:$0xf]
  %v22 = vld [vmem:[%s2 + $0x4] sm:$0xf]
  %v23 = vld [vmem:[%s2 + $0x8] sm:$0xf]
  %v24 = vld [vmem:[%s2 + $0xc] sm:$0xf]
  %v25 = vld [vmem:[%s2 + $0x10] sm:$0xf]
  %v26 = vld [vmem:[%s2 + $0x14] sm:$0xf]
  %v27 = vld [vmem:[%s2 + $0x18] sm:$0xf]
  %v28 = vld [vmem:[%s2 + $0x1c] sm:$0xf]
  %v29 = vld [vmem:[%s2 + $0x20] sm:$0xf]
  %v30 = vld [vmem:[%s2 + $0x24] sm:$0xf]
  %v31 = vld [vmem:[%s2 + $0x28] sm:$0xf]
  %v32 = vld [vmem:[%s2 + $0x2c] sm:$0xf]
  %v33 = vld [vmem:[%s2 + $0x30] sm:$0xf]
  %v34 = vld [vmem:[%s2 + $0x34] sm:$0xf]
  %v35 = vld [vmem:[%s2 + $0x38] sm:$0xf]
  %v36 = vld [vmem:[%s2 + $0x3c] sm:$0xf]
  %v37 = vld [vmem:[%s3] sm:$0x1]
  %v39 = vlaneseq
  %v40 = vshrl.u32 %v39, 7
  %v41 = vsub.s32 0, %v40
  %v42 = vrot.slane %v37, %v41
  %v46 = vunpack.c.l.b16 %v19
  %v47 = vunpack.c.l.b16 %v20
  %v48 = vpack.c.b16 %v47, %v46
  %v66 = vunpack.c.l.b16 %v21
  %v67 = vunpack.c.l.b16 %v22
  %v68 = vunpack.c.l.b16 %v23
  %v69 = vunpack.c.l.b16 %v24
  %v70 = vunpack.c.l.b16 %v25
  %v71 = vunpack.c.l.b16 %v26
  %v72 = vunpack.c.l.b16 %v27
  %v73 = vunpack.c.l.b16 %v28
  %v74 = vunpack.c.l.b16 %v29
  %v75 = vunpack.c.l.b16 %v30
  %v76 = vunpack.c.l.b16 %v31
  %v77 = vunpack.c.l.b16 %v32
  %v78 = vunpack.c.l.b16 %v33
  %v79 = vunpack.c.l.b16 %v34
  %v80 = vunpack.c.l.b16 %v35
  %v81 = vunpack.c.l.b16 %v36
  %v82 = vpack.c.b16 %v67, %v66
  %v83 = vpack.c.b16 %v69, %v68
  %v84 = vpack.c.b16 %v71, %v70
  %v85 = vpack.c.b16 %v73, %v72
  %v86 = vpack.c.b16 %v75, %v74
  %v87 = vpack.c.b16 %v77, %v76
  %v88 = vpack.c.b16 %v79, %v78
  %v89 = vpack.c.b16 %v81, %v80
  %98 = vmatprep.subr.bf16.mxu0 0
  %99 = vmatpush1.bf16.msra.mxu0 %v82
  %100 = vmatprep.subr.bf16.mxu0 0
  %101 = vmatpush1.bf16.msra.mxu0 %v83
  %102 = vmatprep.subr.bf16.mxu0 0
  %103 = vmatpush1.bf16.msra.mxu0 %v84
  %104 = vmatprep.subr.bf16.mxu0 0
  %105 = vmatpush1.bf16.msra.mxu0 %v85
  %106 = vmatprep.subr.bf16.mxu0 0
  %107 = vmatpush1.bf16.msra.mxu0 %v86
  %108 = vmatprep.subr.bf16.mxu0 0
  %109 = vmatpush1.bf16.msra.mxu0 %v87
  %110 = vmatprep.subr.bf16.mxu0 0
  %111 = vmatpush1.bf16.msra.mxu0 %v88
  %112 = vmatprep.subr.bf16.mxu0 0
  %113 = vmatpush1.bf16.msra.mxu0 %v89
  %114 = vmatprep.subr.bf16.mxu0 0
  %115 = vmatpush1.bf16.msra.mxu0 0
  %116 = vmatprep.subr.bf16.mxu0 0
  %117 = vmatpush1.bf16.msra.mxu0 0
  %118 = vmatprep.subr.bf16.mxu0 0
  %119 = vmatpush1.bf16.msra.mxu0 0
  %120 = vmatprep.subr.bf16.mxu0 0
  %121 = vmatpush1.bf16.msra.mxu0 0
  %122 = vmatprep.subr.bf16.mxu0 0
  %123 = vmatpush1.bf16.msra.mxu0 0
  %124 = vmatprep.subr.bf16.mxu0 0
  %125 = vmatpush1.bf16.msra.mxu0 0
  %126 = vmatprep.subr.bf16.mxu0 0
  %127 = vmatpush1.bf16.msra.mxu0 0
  %128 = vmatprep.subr.bf16.mxu0 0
  %129 = vmatpush1.bf16.msra.mxu0 0
  %130 = vmatprep.mubr.bf16.mxu0 0
  %131 = vmatmul.mubr.bf16.gmra.mrb[0].mxu0 %v48
  %v132 = vpop.f32.mrb[0].mxu0
  %v133 = vadd.f32 %v42, %v132
  %v134 = vpop.f32.mrb[0].mxu0
  %v135 = vpop.f32.mrb[0].mxu0
  %v136 = vadd.f32 %v42, %v135
  %v137 = vpop.f32.mrb[0].mxu0
  %138 = vdwg.mxu0
  %s139 = sld [smem:[#allocation2]]
  %v140 = vstv %s139
  %v141 = vrcp.pop %v140
  %v142 = vmul.f32 %v133, %v141
  %v143 = vmul.f32 %v136, %v141
  %144 = vst [vmem:[%s4] sm:$0xff] %v142
  %145 = vst [vmem:[%s4 + $0x8] sm:$0xff] %v143
  // Predicated region
  $region18: #{model_with_temperature_forward.1} parent=0 // pred_check
    _
  $region19: #{model_with_temperature_forward.1} parent=0 // pred_check_branch
    %147 = sbr.rel (0) target = $region21
  $region20: #{model_with_temperature_forward.1} parent=0 // pred_region
    _
  $region21: #{model_with_temperature_forward.1} parent=0 // pred_fallthru
    _
  // Predicated region
  $region22: #{model_with_temperature_forward.1} parent=0 // pred_check
    _
  $region23: #{model_with_temperature_forward.1} parent=0 // pred_check_branch
    %149 = sbr.rel (0) target = $region25
  $region24: #{model_with_temperature_forward.1} parent=0 // pred_region
    _
  $region25: #{model_with_temperature_forward.1} parent=0 // pred_fallthru
    _

</llo_original>
